<compile_context>
chip_gen: v7x
topology: tpu7x:2x2x1
jax: 0.10.0
libtpu: 0.0.40
codegen_flags: <defaults>
</compile_context>

<pallas_src>
import functools

import jax
import jax.numpy as jnp
from jax import lax
from jax.experimental import pallas as pl
from jax.experimental.pallas import tpu as pltpu


def _flash_head_kernel(q_ref, k_ref, v_ref, o_ref, m_scr, l_scr, acc_scr):
    qi = pl.program_id(1)
    ki = pl.program_id(2)

    @pl.when(ki == 0)
    def _init():
        m_scr[...] = jnp.full_like(m_scr, -jnp.inf)
        l_scr[...] = jnp.zeros_like(l_scr)
        acc_scr[...] = jnp.zeros_like(acc_scr)

    def _online_update(apply_mask):
        q = q_ref[0]                       # (tq, d) bf16, pre-scaled by d**-0.5
        k = k_ref[0]                       # (tk, d) bf16
        # Contract the last dims directly (no k.T relayout); bf16 MXU, f32 acc.
        s = lax.dot_general(q, k, (((1,), (1,)), ((), ())),
                            preferred_element_type=jnp.float32)      # (tq, tk)
        if apply_mask:
            # Only the diagonal tile is ever partially masked; with tq == tk the
            # global row/col offsets cancel, so a local iota compare suffices.
            tq, tk = s.shape
            row = lax.broadcasted_iota(jnp.int32, (tq, tk), 0)
            col = lax.broadcasted_iota(jnp.int32, (tq, tk), 1)
            # Large-negative (not -inf) keeps the online-softmax update NaN-safe.
            s = jnp.where(col <= row, s, jnp.float32(-1e30))

        m_prev = m_scr[...]
        m_new = jnp.maximum(m_prev, jnp.max(s, axis=-1, keepdims=True))
        alpha = jnp.exp(m_prev - m_new)
        p = jnp.exp(s - m_new)
        l_scr[...] = alpha * l_scr[...] + jnp.sum(p, axis=-1, keepdims=True)
        acc_scr[...] = alpha * acc_scr[...] + jnp.dot(
            p.astype(jnp.bfloat16), v_ref[0], preferred_element_type=jnp.float32)
        m_scr[...] = m_new

    # Strictly-below-diagonal tiles: unmasked fast path (no iota/cmp/select VPU work).
    @pl.when(ki < qi)
    def _off_diag():
        _online_update(apply_mask=False)

    # Diagonal tile: masked update, then finalize.  With tq == tk this is always
    # the LAST contributing KV tile for this query block; later ki > qi steps are
    # pure no-ops and must stay that way (o_ref is already final for this block).
    @pl.when(ki == qi)
    def _diag_and_finalize():
        _online_update(apply_mask=True)
        inv_l = pl.reciprocal(l_scr[...], approx=True)     # EUP slot, ~free
        o_ref[0] = (acc_scr[...] * inv_l).astype(o_ref.dtype)


def _choose_tile(T):
    # Prefer 256 (not 512): keeps >= 2 query tiles for moderate T so both v7x
    # TensorCores get work on the "parallel" q axis, and 256 is plenty for MXU /
    # lane granularity.  Fall back to a single full-T tile for small sequences.
    for cand in (256, 128):
        if T % cand == 0:
            return cand
    return T


def causal_attention_head(x, wq, wk, wv):
    """x: (B, T, C); wq/wk/wv: (C, d_head) -> (B, T, d_head).

    Equivalent to CausalAttentionHead.forward with dropout_freq = 0.0.
    """
    B, T, C = x.shape
    d_head = wq.shape[1]
    tq = tk = _choose_tile(T)
    assert tq == tk, "finalize-at-diagonal requires square (tq == tk) tiles"
    nq, nk = T // tq, T // tk

    # One fused projection GEMM in plain XLA: (B, T, C) @ (C, 3*d_head).  The
    # kernel then only streams (tile, d_head) q/k/v blocks.
    w3 = jnp.concatenate([wq, wk, wv], axis=1)                    # (C, 3*d_head)
    qkv = jnp.einsum('btc,cd->btd', x, w3)                        # (B, T, 3*d_head) f32
    q, k, v = jnp.split(qkv, 3, axis=-1)
    # Fold the 1/sqrt(d_head) scale into q (tiny elementwise op), then cast all
    # three to bf16: bf16 MXU operands with f32 accumulation inside the kernel,
    # and half the q/k/v HBM bytes.
    q = (q * (d_head ** -0.5)).astype(jnp.bfloat16)
    k = k.astype(jnp.bfloat16)
    v = v.astype(jnp.bfloat16)

    # TODO(synk): the module is a single head (d_head = 16/32 < 128 lanes), so the
    # output/accumulator stores are masked vst.msk; when fusing into multi-head
    # attention, batch H heads per call so H*d_head >= 128 lanes.
    # TODO(synk): for very long T (nq >~ 8) a flattened triangular grid with
    # scalar-prefetch (qi, ki) tables would remove the ~nq^2/2 causal no-op steps.
    return pl.pallas_call(
        _flash_head_kernel,
        out_shape=jax.ShapeDtypeStruct((B, T, d_head), x.dtype),
        grid_spec=pltpu.PrefetchScalarGridSpec(
            num_scalar_prefetch=0,
            grid=(B, nq, nk),
            in_specs=[
                # Query tile (constant across the kv axis).
                pl.BlockSpec((1, tq, d_head), lambda b, qi, ki: (b, qi, 0)),
                # Key / value tiles; clamp ki to qi so causally-skipped steps keep
                # the resident block instead of issuing useless DMAs.
                pl.BlockSpec((1, tk, d_head),
                             lambda b, qi, ki: (b, jnp.minimum(ki, qi), 0)),
                pl.BlockSpec((1, tk, d_head),
                             lambda b, qi, ki: (b, jnp.minimum(ki, qi), 0)),
            ],
            out_specs=pl.BlockSpec((1, tq, d_head), lambda b, qi, ki: (b, qi, 0)),
            scratch_shapes=[
                pltpu.VMEM((tq, 1), jnp.float32),        # running max m
                pltpu.VMEM((tq, 1), jnp.float32),        # running denom l
                pltpu.VMEM((tq, d_head), jnp.float32),   # output accumulator
            ],
        ),
        compiler_params=pltpu.CompilerParams(
            # batch / q-tile axes shard across TensorCores (v7x megacore); the kv
            # axis is the sequential online-softmax reduction.
            dimension_semantics=("parallel", "parallel", "arbitrary"),
            # bf16 (tile, d_head) blocks + f32 scratch are tiny; 32 MiB is ample
            # headroom on every generation (above v5e's 16 MiB scoped default,
            # within v7x's 64 MiB physical VMEM).
            vmem_limit_bytes=32 * 1024 * 1024,
        ),
    )(q, k, v)


def _reference(x, wq, wk, wv):
    q = x @ wq
    k = x @ wk
    v = x @ wv
    s = (q @ jnp.swapaxes(k, -2, -1)) * (k.shape[-1] ** -0.5)
    T = x.shape[1]
    tril = jnp.tril(jnp.ones((T, T), dtype=bool))
    s = jnp.where(tril[None, :, :], s, -jnp.inf)
    p = jax.nn.softmax(s, axis=-1)
    return p @ v


def _run_case(key, B, T, C, d_head):
    kx, kq, kk, kv = jax.random.split(key, 4)
    x = jax.random.normal(kx, (B, T, C), dtype=jnp.float32)
    bound = 1.0 / (C ** 0.5)
    wq = jax.random.uniform(kq, (C, d_head), minval=-bound, maxval=bound, dtype=jnp.float32)
    wk = jax.random.uniform(kk, (C, d_head), minval=-bound, maxval=bound, dtype=jnp.float32)
    wv = jax.random.uniform(kv, (C, d_head), minval=-bound, maxval=bound, dtype=jnp.float32)

    out = jax.block_until_ready(causal_attention_head(x, wq, wk, wv))
    ref = _reference(x, wq, wk, wv)
    assert out.shape == (B, T, d_head)
    # Tolerance covers bf16 MXU operands (consistent with TPU default matmul
    # precision) plus the online-softmax accumulation ordering.
    assert jnp.allclose(out, ref, atol=5e-3, rtol=1e-2), (
        f"mismatch (B={B},T={T}): max abs err "
        f"{float(jnp.max(jnp.abs(out - ref)))}")


if __name__ == "__main__":
    key = jax.random.PRNGKey(0)
    k1, k2 = jax.random.split(key)
    # Small canonical shapes matching the module (single tile per batch row).
    _run_case(k1, B=2, T=8, C=32, d_head=16)
    # Moderate shapes exercising the tiled (qi, ki) grid, the diagonal-only mask
    # path, causal tile skipping and the clamped KV index_map.
    _run_case(k2, B=1, T=512, C=64, d_head=32)

    print("KERNEL_OK")
</pallas_src>

<mosaic_0001>
module attributes {stable_mosaic.version = 11 : i64} {
  func.func @_flash_head_kernel(%arg0: i32, %arg1: i32, %arg2: i32, %arg3: memref<1x8x16xbf16, #tpu.memory_space<vmem>>, %arg4: memref<1x8x16xbf16, #tpu.memory_space<vmem>>, %arg5: memref<1x8x16xbf16, #tpu.memory_space<vmem>>, %arg6: memref<1x8x16xf32, #tpu.memory_space<vmem>>, %arg7: memref<8x1xf32, #tpu.memory_space<vmem>>, %arg8: memref<8x1xf32, #tpu.memory_space<vmem>>, %arg9: memref<8x16xf32, #tpu.memory_space<vmem>>) attributes {dimension_semantics = [#tpu.dimension_semantics<parallel>, #tpu.dimension_semantics<parallel>, #tpu.dimension_semantics<arbitrary>], iteration_bounds = array<i64: 2, 1, 1>, scalar_prefetch = 0 : i64, scratch_operands = 3 : i64, tpu.core_type = #tpu.core_type<tc>, window_params = [{transform_indices = @transform_0, window_bounds = array<i64: 1, 8, 16>}, {transform_indices = @transform_1, window_bounds = array<i64: 1, 8, 16>}, {transform_indices = @transform_2, window_bounds = array<i64: 1, 8, 16>}, {transform_indices = @transform_3, window_bounds = array<i64: 1, 8, 16>}]} {
    %c0_i32 = arith.constant 0 : i32
    %0 = arith.cmpi eq, %arg2, %c0_i32 : i32
    %1 = arith.extui %0 : i1 to i32
    %c0_i32_0 = arith.constant 0 : i32
    %2 = arith.cmpi ne, %1, %c0_i32_0 : i32
    scf.if %2 {
      %cst = arith.constant 0xFF800000 : f32
      %9 = vector.broadcast %cst : f32 to vector<8x1xf32>
      %c0 = arith.constant 0 : index
      %c0_3 = arith.constant 0 : index
      %10 = vector.load %arg7[%c0, %c0_3] : memref<8x1xf32, #tpu.memory_space<vmem>>, vector<8x1xf32>
      tpu.vector_store %arg7[%c0, %c0_3], %9 {strides = array<i32>} : memref<8x1xf32, #tpu.memory_space<vmem>>, vector<8x1xf32>,
      %cst_4 = arith.constant 0.000000e+00 : f32
      %11 = vector.broadcast %cst_4 : f32 to vector<8x1xf32>
      %c0_5 = arith.constant 0 : index
      %c0_6 = arith.constant 0 : index
      %12 = vector.load %arg8[%c0_5, %c0_6] : memref<8x1xf32, #tpu.memory_space<vmem>>, vector<8x1xf32>
      tpu.vector_store %arg8[%c0_5, %c0_6], %11 {strides = array<i32>} : memref<8x1xf32, #tpu.memory_space<vmem>>, vector<8x1xf32>,
      %cst_7 = arith.constant 0.000000e+00 : f32
      %13 = vector.broadcast %cst_7 : f32 to vector<8x16xf32>
      %c0_8 = arith.constant 0 : index
      %c0_9 = arith.constant 0 : index
      %14 = vector.load %arg9[%c0_8, %c0_9] : memref<8x16xf32, #tpu.memory_space<vmem>>, vector<8x16xf32>
      tpu.vector_store %arg9[%c0_8, %c0_9], %13 {strides = array<i32>} : memref<8x16xf32, #tpu.memory_space<vmem>>, vector<8x16xf32>,
    } else {
    }
    %3 = arith.cmpi slt, %arg2, %arg1 : i32
    %4 = arith.extui %3 : i1 to i32
    %c0_i32_1 = arith.constant 0 : i32
    %5 = arith.cmpi ne, %4, %c0_i32_1 : i32
    scf.if %5 {
      %c0 = arith.constant 0 : index
      %c0_3 = arith.constant 0 : index
      %c0_4 = arith.constant 0 : index
      %9 = vector.load %arg3[%c0, %c0_3, %c0_4] : memref<1x8x16xbf16, #tpu.memory_space<vmem>>, vector<1x8x16xbf16>
      %10 = vector.shape_cast %9 : vector<1x8x16xbf16> to vector<8x16xbf16>
      %c0_5 = arith.constant 0 : index
      %c0_6 = arith.constant 0 : index
      %c0_7 = arith.constant 0 : index
      %11 = vector.load %arg4[%c0_5, %c0_6, %c0_7] : memref<1x8x16xbf16, #tpu.memory_space<vmem>>, vector<1x8x16xbf16>
      %12 = vector.shape_cast %11 : vector<1x8x16xbf16> to vector<8x16xbf16>
      %cst = arith.constant dense<0.000000e+00> : vector<8x8xf32>
      %13 = tpu.matmul %10, %12, %cst {dimension_numbers = #tpu.dot_dimension_numbers<[1], [1], [0], [0], [0, 0, 1, 0], [], []>} : vector<8x16xbf16>, vector<8x16xbf16>, vector<8x8xf32> -> vector<8x8xf32>
      %c0_8 = arith.constant 0 : index
      %c0_9 = arith.constant 0 : index
      %14 = vector.load %arg7[%c0_8, %c0_9] : memref<8x1xf32, #tpu.memory_space<vmem>>, vector<8x1xf32>
      %cst_10 = arith.constant dense<0xFF800000> : vector<8xf32>
      %15 = vector.multi_reduction <maximumf>, %13, %cst_10 [1] : vector<8x8xf32> to vector<8xf32>
      %16 = vector.shape_cast %15 : vector<8xf32> to vector<8x1xf32>
      %17 = arith.maximumf %14, %16 : vector<8x1xf32>
      %18 = arith.subf %14, %17 : vector<8x1xf32>
      %19 = math.exp %18 : vector<8x1xf32>
      %20 = vector.broadcast %17 : vector<8x1xf32> to vector<8x8xf32>
      %21 = arith.subf %13, %20 : vector<8x8xf32>
      %22 = math.exp %21 : vector<8x8xf32>
      %c0_11 = arith.constant 0 : index
      %c0_12 = arith.constant 0 : index
      %23 = vector.load %arg8[%c0_11, %c0_12] : memref<8x1xf32, #tpu.memory_space<vmem>>, vector<8x1xf32>
      %24 = arith.mulf %19, %23 : vector<8x1xf32>
      %cst_13 = arith.constant dense<0.000000e+00> : vector<8xf32>
      %25 = vector.multi_reduction <add>, %22, %cst_13 [1] : vector<8x8xf32> to vector<8xf32>
      %26 = vector.shape_cast %25 : vector<8xf32> to vector<8x1xf32>
      %27 = arith.addf %24, %26 : vector<8x1xf32>
      %c0_14 = arith.constant 0 : index
      %c0_15 = arith.constant 0 : index
      %28 = vector.load %arg8[%c0_14, %c0_15] : memref<8x1xf32, #tpu.memory_space<vmem>>, vector<8x1xf32>
      tpu.vector_store %arg8[%c0_14, %c0_15], %27 {strides = array<i32>} : memref<8x1xf32, #tpu.memory_space<vmem>>, vector<8x1xf32>,
      %c0_16 = arith.constant 0 : index
      %c0_17 = arith.constant 0 : index
      %29 = vector.load %arg9[%c0_16, %c0_17] : memref<8x16xf32, #tpu.memory_space<vmem>>, vector<8x16xf32>
      %30 = vector.broadcast %19 : vector<8x1xf32> to vector<8x16xf32>
      %31 = arith.mulf %30, %29 : vector<8x16xf32>
      %32 = arith.truncf %22 : vector<8x8xf32> to vector<8x8xbf16>
      %c0_18 = arith.constant 0 : index
      %c0_19 = arith.constant 0 : index
      %c0_20 = arith.constant 0 : index
      %33 = vector.load %arg5[%c0_18, %c0_19, %c0_20] : memref<1x8x16xbf16, #tpu.memory_space<vmem>>, vector<1x8x16xbf16>
      %34 = vector.shape_cast %33 : vector<1x8x16xbf16> to vector<8x16xbf16>
      %cst_21 = arith.constant dense<0.000000e+00> : vector<8x16xf32>
      %35 = tpu.matmul %32, %34, %cst_21 {dimension_numbers = #tpu.dot_dimension_numbers<[1], [0], [0], [1], [0, 0, 1, 1], [], []>} : vector<8x8xbf16>, vector<8x16xbf16>, vector<8x16xf32> -> vector<8x16xf32>
      %36 = arith.addf %31, %35 : vector<8x16xf32>
      %c0_22 = arith.constant 0 : index
      %c0_23 = arith.constant 0 : index
      %37 = vector.load %arg9[%c0_22, %c0_23] : memref<8x16xf32, #tpu.memory_space<vmem>>, vector<8x16xf32>
      tpu.vector_store %arg9[%c0_22, %c0_23], %36 {strides = array<i32>} : memref<8x16xf32, #tpu.memory_space<vmem>>, vector<8x16xf32>,
      %c0_24 = arith.constant 0 : index
      %c0_25 = arith.constant 0 : index
      %38 = vector.load %arg7[%c0_24, %c0_25] : memref<8x1xf32, #tpu.memory_space<vmem>>, vector<8x1xf32>
      tpu.vector_store %arg7[%c0_24, %c0_25], %17 {strides = array<i32>} : memref<8x1xf32, #tpu.memory_space<vmem>>, vector<8x1xf32>,
    } else {
    }
    %6 = arith.cmpi eq, %arg2, %arg1 : i32
    %7 = arith.extui %6 : i1 to i32
    %c0_i32_2 = arith.constant 0 : i32
    %8 = arith.cmpi ne, %7, %c0_i32_2 : i32
    scf.if %8 {
      %c0 = arith.constant 0 : index
      %c0_3 = arith.constant 0 : index
      %c0_4 = arith.constant 0 : index
      %9 = vector.load %arg3[%c0, %c0_3, %c0_4] : memref<1x8x16xbf16, #tpu.memory_space<vmem>>, vector<1x8x16xbf16>
      %10 = vector.shape_cast %9 : vector<1x8x16xbf16> to vector<8x16xbf16>
      %c0_5 = arith.constant 0 : index
      %c0_6 = arith.constant 0 : index
      %c0_7 = arith.constant 0 : index
      %11 = vector.load %arg4[%c0_5, %c0_6, %c0_7] : memref<1x8x16xbf16, #tpu.memory_space<vmem>>, vector<1x8x16xbf16>
      %12 = vector.shape_cast %11 : vector<1x8x16xbf16> to vector<8x16xbf16>
      %cst = arith.constant dense<0.000000e+00> : vector<8x8xf32>
      %13 = tpu.matmul %10, %12, %cst {dimension_numbers = #tpu.dot_dimension_numbers<[1], [1], [0], [0], [0, 0, 1, 0], [], []>} : vector<8x16xbf16>, vector<8x16xbf16>, vector<8x8xf32> -> vector<8x8xf32>
      %14 = tpu.iota {dimensions = array<i32: 0>} : vector<8x8xi32>
      %15 = tpu.iota {dimensions = array<i32: 1>} : vector<8x8xi32>
      %16 = arith.cmpi sle, %15, %14 : vector<8x8xi32>
      %cst_8 = arith.constant -1.000000e+30 : f32
      %17 = vector.broadcast %cst_8 : f32 to vector<8x8xf32>
      %18 = arith.select %16, %13, %17 : vector<8x8xi1>, vector<8x8xf32>
      %c0_9 = arith.constant 0 : index
      %c0_10 = arith.constant 0 : index
      %19 = vector.load %arg7[%c0_9, %c0_10] : memref<8x1xf32, #tpu.memory_space<vmem>>, vector<8x1xf32>
      %cst_11 = arith.constant dense<0xFF800000> : vector<8xf32>
      %20 = vector.multi_reduction <maximumf>, %18, %cst_11 [1] : vector<8x8xf32> to vector<8xf32>
      %21 = vector.shape_cast %20 : vector<8xf32> to vector<8x1xf32>
      %22 = arith.maximumf %19, %21 : vector<8x1xf32>
      %23 = arith.subf %19, %22 : vector<8x1xf32>
      %24 = math.exp %23 : vector<8x1xf32>
      %25 = vector.broadcast %22 : vector<8x1xf32> to vector<8x8xf32>
      %26 = arith.subf %18, %25 : vector<8x8xf32>
      %27 = math.exp %26 : vector<8x8xf32>
      %c0_12 = arith.constant 0 : index
      %c0_13 = arith.constant 0 : index
      %28 = vector.load %arg8[%c0_12, %c0_13] : memref<8x1xf32, #tpu.memory_space<vmem>>, vector<8x1xf32>
      %29 = arith.mulf %24, %28 : vector<8x1xf32>
      %cst_14 = arith.constant dense<0.000000e+00> : vector<8xf32>
      %30 = vector.multi_reduction <add>, %27, %cst_14 [1] : vector<8x8xf32> to vector<8xf32>
      %31 = vector.shape_cast %30 : vector<8xf32> to vector<8x1xf32>
      %32 = arith.addf %29, %31 : vector<8x1xf32>
      %c0_15 = arith.constant 0 : index
      %c0_16 = arith.constant 0 : index
      %33 = vector.load %arg8[%c0_15, %c0_16] : memref<8x1xf32, #tpu.memory_space<vmem>>, vector<8x1xf32>
      tpu.vector_store %arg8[%c0_15, %c0_16], %32 {strides = array<i32>} : memref<8x1xf32, #tpu.memory_space<vmem>>, vector<8x1xf32>,
      %c0_17 = arith.constant 0 : index
      %c0_18 = arith.constant 0 : index
      %34 = vector.load %arg9[%c0_17, %c0_18] : memref<8x16xf32, #tpu.memory_space<vmem>>, vector<8x16xf32>
      %35 = vector.broadcast %24 : vector<8x1xf32> to vector<8x16xf32>
      %36 = arith.mulf %35, %34 : vector<8x16xf32>
      %37 = arith.truncf %27 : vector<8x8xf32> to vector<8x8xbf16>
      %c0_19 = arith.constant 0 : index
      %c0_20 = arith.constant 0 : index
      %c0_21 = arith.constant 0 : index
      %38 = vector.load %arg5[%c0_19, %c0_20, %c0_21] : memref<1x8x16xbf16, #tpu.memory_space<vmem>>, vector<1x8x16xbf16>
      %39 = vector.shape_cast %38 : vector<1x8x16xbf16> to vector<8x16xbf16>
      %cst_22 = arith.constant dense<0.000000e+00> : vector<8x16xf32>
      %40 = tpu.matmul %37, %39, %cst_22 {dimension_numbers = #tpu.dot_dimension_numbers<[1], [0], [0], [1], [0, 0, 1, 1], [], []>} : vector<8x8xbf16>, vector<8x16xbf16>, vector<8x16xf32> -> vector<8x16xf32>
      %41 = arith.addf %36, %40 : vector<8x16xf32>
      %c0_23 = arith.constant 0 : index
      %c0_24 = arith.constant 0 : index
      %42 = vector.load %arg9[%c0_23, %c0_24] : memref<8x16xf32, #tpu.memory_space<vmem>>, vector<8x16xf32>
      tpu.vector_store %arg9[%c0_23, %c0_24], %41 {strides = array<i32>} : memref<8x16xf32, #tpu.memory_space<vmem>>, vector<8x16xf32>,
      %c0_25 = arith.constant 0 : index
      %c0_26 = arith.constant 0 : index
      %43 = vector.load %arg7[%c0_25, %c0_26] : memref<8x1xf32, #tpu.memory_space<vmem>>, vector<8x1xf32>
      tpu.vector_store %arg7[%c0_25, %c0_26], %22 {strides = array<i32>} : memref<8x1xf32, #tpu.memory_space<vmem>>, vector<8x1xf32>,
      %c0_27 = arith.constant 0 : index
      %c0_28 = arith.constant 0 : index
      %44 = vector.load %arg8[%c0_27, %c0_28] : memref<8x1xf32, #tpu.memory_space<vmem>>, vector<8x1xf32>
      %45 = tpu.reciprocal %44 {approx = true} : vector<8x1xf32> -> vector<8x1xf32>
      %c0_29 = arith.constant 0 : index
      %c0_30 = arith.constant 0 : index
      %46 = vector.load %arg9[%c0_29, %c0_30] : memref<8x16xf32, #tpu.memory_space<vmem>>, vector<8x16xf32>
      %47 = vector.broadcast %45 : vector<8x1xf32> to vector<8x16xf32>
      %48 = arith.mulf %46, %47 : vector<8x16xf32>
      %c0_31 = arith.constant 0 : index
      %c0_32 = arith.constant 0 : index
      %c0_33 = arith.constant 0 : index
      %49 = vector.load %arg6[%c0_31, %c0_32, %c0_33] : memref<1x8x16xf32, #tpu.memory_space<vmem>>, vector<1x8x16xf32>
      %50 = vector.shape_cast %49 : vector<1x8x16xf32> to vector<8x16xf32>
      %51 = vector.shape_cast %48 : vector<8x16xf32> to vector<1x8x16xf32>
      tpu.vector_store %arg6[%c0_31, %c0_32, %c0_33], %51 {strides = array<i32>} : memref<1x8x16xf32, #tpu.memory_space<vmem>>, vector<1x8x16xf32>,
    } else {
    }
    return
  }
  func.func @transform_0(%arg0: i32, %arg1: i32, %arg2: i32) -> (i32, i32, i32) {
    %c0_i32 = arith.constant 0 : i32
    %c0_i32_0 = arith.constant 0 : i32
    return %arg0, %arg1, %c0_i32 : i32, i32, i32
  }
  func.func @transform_1(%arg0: i32, %arg1: i32, %arg2: i32) -> (i32, i32, i32) {
    %0 = arith.minsi %arg2, %arg1 : i32
    %c0_i32 = arith.constant 0 : i32
    %c0_i32_0 = arith.constant 0 : i32
    return %arg0, %0, %c0_i32 : i32, i32, i32
  }
  func.func @transform_2(%arg0: i32, %arg1: i32, %arg2: i32) -> (i32, i32, i32) {
    %0 = arith.minsi %arg2, %arg1 : i32
    %c0_i32 = arith.constant 0 : i32
    %c0_i32_0 = arith.constant 0 : i32
    return %arg0, %0, %c0_i32 : i32, i32, i32
  }
  func.func @transform_3(%arg0: i32, %arg1: i32, %arg2: i32) -> (i32, i32, i32) {
    %c0_i32 = arith.constant 0 : i32
    %c0_i32_0 = arith.constant 0 : i32
    return %arg0, %arg1, %c0_i32 : i32, i32, i32
  }
}

</mosaic_0001>

<llo_original>
// kernel: tpu_custom_call.1
$region0: #{tpu_custom_call.1}
  #allocation0 [shape = 'u32[]', space=smem, size = 0x4, offset = 0x4, fixed_abs, tag = 'smem constant byte address 0x4 - core index']
  #allocation1 [shape = 'u32[144,128]{1,0:T(1,128)}', space=vmem, size = 0x12000, scoped, tag = 'internal scratch']
  #allocation2 [shape = 'f32[8,1]{1,0:T(8,128)}', space=vmem, size = 0x1000, scoped, tag = 'scratch operand']
  #allocation3 [shape = 'f32[8,1]{1,0:T(8,128)}', space=vmem, size = 0x1000, scoped, tag = 'scratch operand']
  #allocation4 [shape = 'f32[8,16]{1,0:T(8,128)}', space=vmem, size = 0x1000, scoped, tag = 'scratch operand']
  %s0 = inlined_call_operand.hbm [shape: bf16[2,8,16], index: 0, kind: input, shape index: {}]
  %s1 = inlined_call_operand.hbm [shape: bf16[2,8,16], index: 1, kind: input, shape index: {}]
  %s2 = inlined_call_operand.hbm [shape: bf16[2,8,16], index: 2, kind: input, shape index: {}]
  %s3 = inlined_call_operand.hbm [shape: f32[2,8,16], index: 3, kind: output, shape index: {}]
  %s4 = sld [smem:[#allocation0]]
  $region69: #{tpu_custom_call.1} parent=0
    _
  %s6 = ssub.s32 1, %s4
  %s7 = scalar_select 0, %s6, %s4
  $region1: #{tpu_custom_call.1} parent=0
    #allocation5 [shape = 'u8[4096]{0}', space=vmem, size = 0x1000, scoped, tag = 'input window, operand 0']
    #allocation6 [shape = 's32[2]{0}', space=sflag, size = 0x8, scoped, tag = 'scoped memory for tpu_custom_call.1']
    #allocation7 [shape = 's32[2]{0}', space=sflag, size = 0x8, scoped, tag = 'scoped memory for tpu_custom_call.1']
    #allocation8 [shape = 'u8[4096]{0}', space=vmem, size = 0x1000, scoped, tag = 'input window, operand 1']
    #allocation9 [shape = 's32[2]{0}', space=sflag, size = 0x8, scoped, tag = 'scoped memory for tpu_custom_call.1']
    #allocation10 [shape = 'u8[4096]{0}', space=vmem, size = 0x1000, scoped, tag = 'input window, operand 2']
    #allocation11 [shape = 'u8[8192]{0}', space=vmem, size = 0x2000, scoped, tag = 'output window, operand 0']
    %8 = vsyncpa [#allocation6], 0
    %s9 = scalar_lea.sflag [#allocation6], 1
    %10 = vsyncpa %s9, 0
    %11 = vsyncpa [#allocation9], 0
    %s12 = scalar_lea.sflag [#allocation9], 1
    %13 = vsyncpa %s12, 0
    %14 = vsyncpa [#allocation7], 0
    %s15 = scalar_lea.sflag [#allocation7], 1
    %16 = vsyncpa %s15, 0
    loop: start=0, step=1, limit=4
    $region2: #{tpu_custom_call.1} parent=1 // loop_pre_header
      _
    $region3: #{tpu_custom_call.1} parent=1 // loop_header
      %s18 = sphi 0, %s22
      %p19 = scmp.ge.s32.totalorder %s18, 4
      %s25 = sphi 0, %s44
      %s26 = sphi 0, %s40
      %s27 = sphi 0, %s36
      %s28 = sphi 0, %s25
      %s29 = sphi 0, %s26
      %s30 = sphi 0, %s27
      %s31 = sphi 0, %s28
      %s32 = sphi 0, %s29
      %s33 = sphi 0, %s30
      %s49 = sphi 0, %s51
      %s52 = sphi 0, %s49
      %s53 = sphi 0, %s52
      %s69 = sphi 0, %s53
      %s81 = sphi 0, %s83
      %s84 = sphi 0, %s81
      %s85 = sphi 0, %s84
      %s101 = sphi 0, %s85
      %s113 = sphi 0, %s115
      %s116 = sphi 0, %s113
      %s117 = sphi 0, %s116
      %s133 = sphi 0, %s117
      %s141 = sphi 0, %s143
      %s144 = sphi 0, %s141
      %s145 = sphi 0, %s144
      %s161 = sphi 0, %s145
    $region4: #{tpu_custom_call.1} parent=1 // loop_header_branch
      %21 = sbr.rel (%p19) target = $region8
    $region5: #{tpu_custom_call.1} parent=1 // loop_body
      %s23 = ssub.s32 %s18, 1
      %s24 = ssub.s32 %s18, 2
      %s34 = sadd.s32 1, %s27
      %p35 = scmp.ge.s32.totalorder %s34, 1
      %s36 = scalar_select %p35, 0, %s34
      %s37 = sadd.s32 1, %s26
      %s38 = scalar_select %p35, %s37, %s26
      %p39 = scmp.ge.s32.totalorder %s38, 1
      %s40 = scalar_select %p39, 0, %s38
      %s41 = sadd.s32 1, %s25
      %s42 = scalar_select %p39, %s41, %s25
      %p43 = scmp.ge.s32.totalorder %s42, 2
      %s44 = scalar_select %p43, 0, %s42
      %s45 = ssub.s32 %s25, %s44
      %s46 = ssub.s32 %s26, %s40
      %s47 = sor.u32 %s45, %s46
      %p48 = scmp.eq.s32.totalorder %s47, 0
      %s50 = sadd.s32 %s49, 1
      %s51 = scalar_select %p48, %s49, %s50
      %p54 = pneg %p48
      %p55 = scmp.eq.s32.totalorder %s18, 1
      %p56 = por %p54, %p55
      %p57 = scmp.ne.s32.totalorder %s49, %s52
      %p58 = scmp.eq.s32.totalorder %s18, 0
      %p59 = por %p57, %p58
      %p60 = scmp.ne.s32.totalorder %s49, %s52
      %p61 = scmp.eq.s32.totalorder %s23, 1
      %p62 = por %p60, %p61
      %p63 = scmp.ne.s32.totalorder %s52, %s53
      %p64 = scmp.eq.s32.totalorder %s23, 0
      %p65 = por %p63, %p64
      %p66 = scmp.ne.s32.totalorder %s52, %s53
      %p67 = scmp.eq.s32.totalorder %s24, 1
      %p68 = por %p66, %p67
      %p70 = scmp.ne.s32.totalorder %s53, %s69
      %p71 = scmp.eq.s32.totalorder %s24, 0
      %p72 = por %p70, %p71
      %p73 = scmp.lt.s32.totalorder %s27, %s26
      %s74 = scalar_select %p73, %s27, %s26
      %p75 = scmp.lt.s32.totalorder %s36, %s40
      %s76 = scalar_select %p75, %s36, %s40
      %s77 = ssub.s32 %s25, %s44
      %s78 = ssub.s32 %s74, %s76
      %s79 = sor.u32 %s77, %s78
      %p80 = scmp.eq.s32.totalorder %s79, 0
      %s82 = sadd.s32 %s81, 1
      %s83 = scalar_select %p80, %s81, %s82
      %p86 = pneg %p80
      %p87 = scmp.eq.s32.totalorder %s18, 1
      %p88 = por %p86, %p87
      %p89 = scmp.ne.s32.totalorder %s81, %s84
      %p90 = scmp.eq.s32.totalorder %s18, 0
      %p91 = por %p89, %p90
      %p92 = scmp.ne.s32.totalorder %s81, %s84
      %p93 = scmp.eq.s32.totalorder %s23, 1
      %p94 = por %p92, %p93
      %p95 = scmp.ne.s32.totalorder %s84, %s85
      %p96 = scmp.eq.s32.totalorder %s23, 0
      %p97 = por %p95, %p96
      %p98 = scmp.ne.s32.totalorder %s84, %s85
      %p99 = scmp.eq.s32.totalorder %s24, 1
      %p100 = por %p98, %p99
      %p102 = scmp.ne.s32.totalorder %s85, %s101
      %p103 = scmp.eq.s32.totalorder %s24, 0
      %p104 = por %p102, %p103
      %p105 = scmp.lt.s32.totalorder %s27, %s26
      %s106 = scalar_select %p105, %s27, %s26
      %p107 = scmp.lt.s32.totalorder %s36, %s40
      %s108 = scalar_select %p107, %s36, %s40
      %s109 = ssub.s32 %s25, %s44
      %s110 = ssub.s32 %s106, %s108
      %s111 = sor.u32 %s109, %s110
      %p112 = scmp.eq.s32.totalorder %s111, 0
      %s114 = sadd.s32 %s113, 1
      %s115 = scalar_select %p112, %s113, %s114
      %p118 = pneg %p112
      %p119 = scmp.eq.s32.totalorder %s18, 1
      %p120 = por %p118, %p119
      %p121 = scmp.ne.s32.totalorder %s113, %s116
      %p122 = scmp.eq.s32.totalorder %s18, 0
      %p123 = por %p121, %p122
      %p124 = scmp.ne.s32.totalorder %s113, %s116
      %p125 = scmp.eq.s32.totalorder %s23, 1
      %p126 = por %p124, %p125
      %p127 = scmp.ne.s32.totalorder %s116, %s117
      %p128 = scmp.eq.s32.totalorder %s23, 0
      %p129 = por %p127, %p128
      %p130 = scmp.ne.s32.totalorder %s116, %s117
      %p131 = scmp.eq.s32.totalorder %s24, 1
      %p132 = por %p130, %p131
      %p134 = scmp.ne.s32.totalorder %s117, %s133
      %p135 = scmp.eq.s32.totalorder %s24, 0
      %p136 = por %p134, %p135
      %s137 = ssub.s32 %s25, %s44
      %s138 = ssub.s32 %s26, %s40
      %s139 = sor.u32 %s137, %s138
      %p140 = scmp.eq.s32.totalorder %s139, 0
      %s142 = sadd.s32 %s141, 1
      %s143 = scalar_select %p140, %s141, %s142
      %p146 = pneg %p140
      %p147 = scmp.eq.s32.totalorder %s18, 1
      %p148 = por %p146, %p147
      %p149 = scmp.ne.s32.totalorder %s141, %s144
      %p150 = scmp.eq.s32.totalorder %s18, 0
      %p151 = por %p149, %p150
      %p152 = scmp.ne.s32.totalorder %s141, %s144
      %p153 = scmp.eq.s32.totalorder %s23, 1
      %p154 = por %p152, %p153
      %p155 = scmp.ne.s32.totalorder %s144, %s145
      %p156 = scmp.eq.s32.totalorder %s23, 0
      %p157 = por %p155, %p156
      %p158 = scmp.ne.s32.totalorder %s144, %s145
      %p159 = scmp.eq.s32.totalorder %s24, 1
      %p160 = por %p158, %p159
      %p162 = scmp.ne.s32.totalorder %s145, %s161
      %p163 = scmp.eq.s32.totalorder %s24, 0
      %p164 = por %p162, %p163
      %p165 = scmp.le.s32.totalorder 1, %s18
      %p166 = scmp.lt.s32.totalorder %s18, 3
      %p167 = pnand %p165, %p166
      %p168 = pneg %p167
      // Predicated region
      $region9: #{tpu_custom_call.1} parent=5 // pred_check
        _
      $region10: #{tpu_custom_call.1} parent=5 // pred_check_branch
        %170 = sbr.rel (%p167) target = $region12
      $region11: #{tpu_custom_call.1} parent=5 // pred_region
        %s171 = ssub.s32 %s18, 1
      $region12: #{tpu_custom_call.1} parent=5 // pred_fallthru
        _
      %p172 = scmp.lt.s32.totalorder %s18, 2
      // Predicated region
      $region13: #{tpu_custom_call.1} parent=5 // pred_check
        %p173 = pneg %p172
      $region14: #{tpu_custom_call.1} parent=5 // pred_check_branch
        %175 = sbr.rel (%p173) target = $region16
      $region15: #{tpu_custom_call.1} parent=5 // pred_region
        // Predicated region
        $region17: #{tpu_custom_call.1} parent=15 // pred_check
          %p176 = pneg %p59
        $region18: #{tpu_custom_call.1} parent=15 // pred_check_branch
          %178 = sbr.rel (%p176) target = $region20
        $region19: #{tpu_custom_call.1} parent=15 // pred_region
          %s179 = sand.u32 %s49, 1
          %s180 = scalar_lea.sflag [#allocation6], %s179
          %s181 = sand.u32 %s49, 1
          %s182 = smul.addr %s181, 4
          %s183 = scalar_lea.vmem [#allocation5], %s182
          %s185 = ssub.s32 64, 64
          %186 = vsyncadd %s180, %s185
          %s187 = sadd.s32 %s26, %s25
          %s188 = smul.addr %s187, 64
          %s189 = scalar_lea.hbm %s0, %s188
          %s191 = sshll.u32 %s183, 4
          %s192 = int_to_ptr.vmem [resolvable:$true] %s191
          %194 = dma.hbm_to_vmem [thread:$0]  %s189, 64, %s192, %s180
        $region20: #{tpu_custom_call.1} parent=15 // pred_fallthru
          _
        // Predicated region
        $region21: #{tpu_custom_call.1} parent=15 // pred_check
          %p195 = pneg %p91
        $region22: #{tpu_custom_call.1} parent=15 // pred_check_branch
          %197 = sbr.rel (%p195) target = $region24
        $region23: #{tpu_custom_call.1} parent=15 // pred_region
          %s198 = sand.u32 %s18, 1
          %s199 = scalar_lea.sflag [#allocation9], %s198
          %s200 = sand.u32 %s81, 1
          %s201 = smul.addr %s200, 4
          %s202 = scalar_lea.vmem [#allocation8], %s201
          %p203 = scmp.lt.s32.totalorder %s27, %s26
          %s204 = scalar_select %p203, %s27, %s26
          %s206 = ssub.s32 64, 64
          %207 = vsyncadd %s199, %s206
          %s208 = sadd.s32 %s204, %s25
          %s209 = smul.addr %s208, 64
          %s210 = scalar_lea.hbm %s1, %s209
          %s212 = sshll.u32 %s202, 4
          %s213 = int_to_ptr.vmem [resolvable:$true] %s212
          %215 = dma.hbm_to_vmem [thread:$0]  %s210, 64, %s213, %s199
        $region24: #{tpu_custom_call.1} parent=15 // pred_fallthru
          _
        // Predicated region
        $region25: #{tpu_custom_call.1} parent=15 // pred_check
          %p216 = pneg %p123
        $region26: #{tpu_custom_call.1} parent=15 // pred_check_branch
          %218 = sbr.rel (%p216) target = $region28
        $region27: #{tpu_custom_call.1} parent=15 // pred_region
          %s219 = sand.u32 %s18, 1
          %s220 = scalar_lea.sflag [#allocation9], %s219
          %s221 = sand.u32 %s113, 1
          %s222 = smul.addr %s221, 4
          %s223 = scalar_lea.vmem [#allocation10], %s222
          %p224 = scmp.lt.s32.totalorder %s27, %s26
          %s225 = scalar_select %p224, %s27, %s26
          %s227 = ssub.s32 64, 64
          %228 = vsyncadd %s220, %s227
          %s229 = sadd.s32 %s225, %s25
          %s230 = smul.addr %s229, 64
          %s231 = scalar_lea.hbm %s2, %s230
          %s233 = sshll.u32 %s223, 4
          %s234 = int_to_ptr.vmem [resolvable:$true] %s233
          %236 = dma.hbm_to_vmem [thread:$0]  %s231, 64, %s234, %s220
        $region28: #{tpu_custom_call.1} parent=15 // pred_fallthru
          _
      $region16: #{tpu_custom_call.1} parent=5 // pred_fallthru
        _
      %p237 = scmp.le.s32.totalorder 1, %s18
      %p238 = scmp.lt.s32.totalorder %s18, 3
      %p239 = pnand %p237, %p238
      %p240 = pneg %p239
      // Predicated region
      $region29: #{tpu_custom_call.1} parent=5 // pred_check
        _
      $region30: #{tpu_custom_call.1} parent=5 // pred_check_branch
        %242 = sbr.rel (%p239) target = $region32
      $region31: #{tpu_custom_call.1} parent=5 // pred_region
        %s243 = ssub.s32 %s18, 1
        %s244 = sand.u32 %s52, 1
        %s245 = scalar_lea.sflag [#allocation6], %s244
        %s246 = sand.u32 %s52, 1
        %s247 = smul.addr %s246, 4
        %s248 = scalar_lea.vmem [#allocation5], %s247
        // Predicated region
        $region33: #{tpu_custom_call.1} parent=31 // pred_check
          %p249 = pneg %p65
        $region34: #{tpu_custom_call.1} parent=31 // pred_check_branch
          %251 = sbr.rel (%p249) target = $region36
        $region35: #{tpu_custom_call.1} parent=31 // pred_region
          %252 = dma.done %s245, 64
        $region36: #{tpu_custom_call.1} parent=31 // pred_fallthru
          _
        %s253 = sand.u32 %s23, 1
        %s254 = scalar_lea.sflag [#allocation9], %s253
        %s255 = sand.u32 %s84, 1
        %s256 = smul.addr %s255, 4
        %s257 = scalar_lea.vmem [#allocation8], %s256
        // Predicated region
        $region37: #{tpu_custom_call.1} parent=31 // pred_check
          %p258 = pneg %p97
        $region38: #{tpu_custom_call.1} parent=31 // pred_check_branch
          %260 = sbr.rel (%p258) target = $region40
        $region39: #{tpu_custom_call.1} parent=31 // pred_region
          %261 = dma.done %s254, 64
        $region40: #{tpu_custom_call.1} parent=31 // pred_fallthru
          _
        %s262 = sand.u32 %s23, 1
        %s263 = scalar_lea.sflag [#allocation9], %s262
        %s264 = sand.u32 %s116, 1
        %s265 = smul.addr %s264, 4
        %s266 = scalar_lea.vmem [#allocation10], %s265
        // Predicated region
        $region41: #{tpu_custom_call.1} parent=31 // pred_check
          %p267 = pneg %p129
        $region42: #{tpu_custom_call.1} parent=31 // pred_check_branch
          %269 = sbr.rel (%p267) target = $region44
        $region43: #{tpu_custom_call.1} parent=31 // pred_region
          %270 = dma.done %s263, 64
        $region44: #{tpu_custom_call.1} parent=31 // pred_fallthru
          _
        %s271 = sand.u32 %s52, 1
        %s272 = scalar_lea.sflag [#allocation6], %s271
        %s273 = sand.u32 %s52, 1
        %s274 = smul.addr %s273, 4
        %s275 = scalar_lea.vmem [#allocation5], %s274
        %p276 = pneg %p65
        %p277 = pneg %p62
        %s278 = sand.u32 %s23, 1
        %s279 = scalar_lea.sflag [#allocation9], %s278
        %s280 = sand.u32 %s84, 1
        %s281 = smul.addr %s280, 4
        %s282 = scalar_lea.vmem [#allocation8], %s281
        %p283 = pneg %p97
        %p284 = pneg %p94
        %s285 = sand.u32 %s23, 1
        %s286 = scalar_lea.sflag [#allocation9], %s285
        %s287 = sand.u32 %s116, 1
        %s288 = smul.addr %s287, 4
        %s289 = scalar_lea.vmem [#allocation10], %s288
        %p290 = pneg %p129
        %p291 = pneg %p126
        %p292 = pneg %p157
        %p293 = pneg %p154
        %s294 = sand.u32 %s144, 1
        %s295 = scalar_lea.sflag [#allocation7], %s294
        %s296 = sand.u32 %s144, 1
        %s297 = smul.addr %s296, 8
        %s298 = scalar_lea.vmem [#allocation11], %s297
        %p299 = scmp.lt.s32.totalorder %s30, %s29
        %s300 = scalar_select %p299, %s30, %s29
        %p301 = scmp.lt.s32.totalorder %s30, %s29
        %s302 = scalar_select %p301, %s30, %s29
        %p304 = scmp.eq.s32.totalorder %s30, 0
        // Predicated region
        $region45: #{tpu_custom_call.1} parent=31 // pred_check
          %p305 = pneg %p304
        $region46: #{tpu_custom_call.1} parent=31 // pred_check_branch
          %307 = sbr.rel (%p305) target = $region48
        $region47: #{tpu_custom_call.1} parent=31 // pred_region
          %vm308 = vcmask 7168
          %309 = vst.msk [vmem:[#allocation2] sm:$0xff] %vm308, -inf
          %310 = vst.msk [vmem:[#allocation3] sm:$0xff] %vm308, 0.0
          %vm311 = vcmask 130048
          %312 = vst.msk [vmem:[#allocation4] sm:$0xff] %vm311, 0.0
        $region48: #{tpu_custom_call.1} parent=31 // pred_fallthru
          _
        %p313 = scmp.lt.s32.totalorder %s30, %s29
        // Predicated region
        $region49: #{tpu_custom_call.1} parent=31 // pred_check
          %p314 = pneg %p313
        $region50: #{tpu_custom_call.1} parent=31 // pred_check_branch
          %316 = sbr.rel (%p314) target = $region52
        $region51: #{tpu_custom_call.1} parent=31 // pred_region
          %v317 = vld [vmem:[%s248] sm:$0xf]
          %v318 = vld [vmem:[%s257] sm:$0xf]
          %vm319 = vcmask 130048
          %v321 = vsel %vm319, %v317, 0
          %v324 = vsel %vm319, %v318, 0
          %326 = vmatprep.subr.bf16.mxu0 0
          %327 = vmatpush1.bf16.xpose.msra.mxu0 %v324
          %328 = vmatprep.subr.bf16.mxu0 0
          %329 = vmatpush1.bf16.xpose.msra.mxu0 0
          %330 = vmatprep.subr.bf16.mxu0 0
          %331 = vmatpush1.bf16.xpose.msra.mxu0 0
          %332 = vmatprep.subr.bf16.mxu0 0
          %333 = vmatpush1.bf16.xpose.msra.mxu0 0
          %334 = vmatprep.subr.bf16.mxu0 0
          %335 = vmatpush1.bf16.xpose.msra.mxu0 0
          %336 = vmatprep.subr.bf16.mxu0 0
          %337 = vmatpush1.bf16.xpose.msra.mxu0 0
          %338 = vmatprep.subr.bf16.mxu0 0
          %339 = vmatpush1.bf16.xpose.msra.mxu0 0
          %340 = vmatprep.subr.bf16.mxu0 0
          %341 = vmatpush1.bf16.xpose.msra.mxu0 0
          %342 = vmatprep.subr.bf16.mxu0 0
          %343 = vmatpush1.bf16.xpose.msra.mxu0 0
          %344 = vmatprep.subr.bf16.mxu0 0
          %345 = vmatpush1.bf16.xpose.msra.mxu0 0
          %346 = vmatprep.subr.bf16.mxu0 0
          %347 = vmatpush1.bf16.xpose.msra.mxu0 0
          %348 = vmatprep.subr.bf16.mxu0 0
          %349 = vmatpush1.bf16.xpose.msra.mxu0 0
          %350 = vmatprep.subr.bf16.mxu0 0
          %351 = vmatpush1.bf16.xpose.msra.mxu0 0
          %352 = vmatprep.subr.bf16.mxu0 0
          %353 = vmatpush1.bf16.xpose.msra.mxu0 0
          %354 = vmatprep.subr.bf16.mxu0 0
          %355 = vmatpush1.bf16.xpose.msra.mxu0 0
          %356 = vmatprep.subr.bf16.mxu0 0
          %357 = vmatpush1.bf16.xpose.msra.mxu0 0
          %358 = vmatprep.mubr.bf16.mxu0 0
          %359 = vmatmul.mubr.bf16.gmra.mrb[0].mxu0 %v321
          %v360 = vpop.f32.mrb[0].mxu0
          %v361 = vadd.f32 0.0, %v360
          %v362 = vpop.f32.mrb[0].mxu0
          %v363 = vpop.f32.mrb[0].mxu0
          %v364 = vpop.f32.mrb[0].mxu0
          %365 = vdwg.mxu0
          %v366 = vld [vmem:[#allocation2] sm:$0xff]
          %vm367 = vcmask 64512
          %v368 = vsel %vm367, %v361, -inf
          %369 = vmax.xlane.f32.xlu0 %v368
          %v370 = vpop.xlane.xlu0 %369
          %v371 = vmax.f32 %v366, %v370
          %v372 = vsub.f32 %v366, %v371
          %v373 = vmul.f32 %v372, 1.442695
          %v374 = vpow.pop %v373
          %376 = vset.pattern.permute.xlu0 0
          %377 = vperm.xlu0 %376, %v371
          %v378 = vpop.permute.xlu0 %377
          %v380 = vsub.f32 %v361, %v378
          %v381 = vmul.f32 %v380, 1.442695
          %v382 = vpow.pop %v381
          %v383 = vld [vmem:[#allocation3] sm:$0xff]
          %v384 = vmul.f32 %v374, %v383
          %v385 = vsel %vm367, %v382, 0.0
          %386 = vadd.xlane.f32.xlu0 %v385
          %v387 = vpop.xlane.xlu0 %386
          %v388 = vadd.f32 %v384, %v387
          %vm389 = vcmask 7168
          %390 = vst.msk [vmem:[#allocation3] sm:$0xff] %vm389, %v388
          %v391 = vld [vmem:[#allocation4] sm:$0xff]
          %393 = vset.pattern.permute.xlu0 0
          %394 = vperm.xlu0 %393, %v374
          %v395 = vpop.permute.xlu0 %394
          %v397 = vmul.f32 %v395, %v391
          %v398 = vpack.c.bf16 %v382, %v382
          %v399 = vld [vmem:[%s266] sm:$0xf]
          %v401 = vsel %vm367, %v398, 0
          %vm403 = vcmask 1043456
          %v405 = vsel %vm403, %v399, 0
          %407 = vmatprep.subr.bf16.mxu0 0
          %408 = vmatpush1.bf16.msra.mxu0 %v405
          %409 = vmatprep.subr.bf16.mxu0 0
          %410 = vmatpush1.bf16.msra.mxu0 0
          %411 = vmatprep.subr.bf16.mxu0 0
          %412 = vmatpush1.bf16.msra.mxu0 0
          %413 = vmatprep.subr.bf16.mxu0 0
          %414 = vmatpush1.bf16.msra.mxu0 0
          %415 = vmatprep.subr.bf16.mxu0 0
          %416 = vmatpush1.bf16.msra.mxu0 0
          %417 = vmatprep.subr.bf16.mxu0 0
          %418 = vmatpush1.bf16.msra.mxu0 0
          %419 = vmatprep.subr.bf16.mxu0 0
          %420 = vmatpush1.bf16.msra.mxu0 0
          %421 = vmatprep.subr.bf16.mxu0 0
          %422 = vmatpush1.bf16.msra.mxu0 0
          %423 = vmatprep.subr.bf16.mxu0 0
          %424 = vmatpush1.bf16.msra.mxu0 0
          %425 = vmatprep.subr.bf16.mxu0 0
          %426 = vmatpush1.bf16.msra.mxu0 0
          %427 = vmatprep.subr.bf16.mxu0 0
          %428 = vmatpush1.bf16.msra.mxu0 0
          %429 = vmatprep.subr.bf16.mxu0 0
          %430 = vmatpush1.bf16.msra.mxu0 0
          %431 = vmatprep.subr.bf16.mxu0 0
          %432 = vmatpush1.bf16.msra.mxu0 0
          %433 = vmatprep.subr.bf16.mxu0 0
          %434 = vmatpush1.bf16.msra.mxu0 0
          %435 = vmatprep.subr.bf16.mxu0 0
          %436 = vmatpush1.bf16.msra.mxu0 0
          %437 = vmatprep.subr.bf16.mxu0 0
          %438 = vmatpush1.bf16.msra.mxu0 0
          %439 = vmatprep.mubr.bf16.mxu0 0
          %440 = vmatmul.mubr.bf16.gmra.mrb[0].mxu0 %v401
          %v441 = vpop.f32.mrb[0].mxu0
          %v442 = vadd.f32 0.0, %v441
          %v443 = vpop.f32.mrb[0].mxu0
          %v444 = vpop.f32.mrb[0].mxu0
          %v445 = vpop.f32.mrb[0].mxu0
          %446 = vdwg.mxu0
          %v447 = vadd.f32 %v397, %v442
          %448 = vst.msk [vmem:[#allocation4] sm:$0xff] %vm319, %v447
          %449 = vst.msk [vmem:[#allocation2] sm:$0xff] %vm389, %v371
        $region52: #{tpu_custom_call.1} parent=31 // pred_fallthru
          _
        %p450 = scmp.eq.s32.totalorder %s30, %s29
        // Predicated region
        $region53: #{tpu_custom_call.1} parent=31 // pred_check
          %p451 = pneg %p450
        $region54: #{tpu_custom_call.1} parent=31 // pred_check_branch
          %453 = sbr.rel (%p451) target = $region56
        $region55: #{tpu_custom_call.1} parent=31 // pred_region
          %v454 = vld [vmem:[%s248] sm:$0xf]
          %v455 = vld [vmem:[%s257] sm:$0xf]
          %vm456 = vcmask 130048
          %v458 = vsel %vm456, %v454, 0
          %v461 = vsel %vm456, %v455, 0
          %463 = vmatprep.subr.bf16.mxu0 0
          %464 = vmatpush1.bf16.xpose.msra.mxu0 %v461
          %465 = vmatprep.subr.bf16.mxu0 0
          %466 = vmatpush1.bf16.xpose.msra.mxu0 0
          %467 = vmatprep.subr.bf16.mxu0 0
          %468 = vmatpush1.bf16.xpose.msra.mxu0 0
          %469 = vmatprep.subr.bf16.mxu0 0
          %470 = vmatpush1.bf16.xpose.msra.mxu0 0
          %471 = vmatprep.subr.bf16.mxu0 0
          %472 = vmatpush1.bf16.xpose.msra.mxu0 0
          %473 = vmatprep.subr.bf16.mxu0 0
          %474 = vmatpush1.bf16.xpose.msra.mxu0 0
          %475 = vmatprep.subr.bf16.mxu0 0
          %476 = vmatpush1.bf16.xpose.msra.mxu0 0
          %477 = vmatprep.subr.bf16.mxu0 0
          %478 = vmatpush1.bf16.xpose.msra.mxu0 0
          %479 = vmatprep.subr.bf16.mxu0 0
          %480 = vmatpush1.bf16.xpose.msra.mxu0 0
          %481 = vmatprep.subr.bf16.mxu0 0
          %482 = vmatpush1.bf16.xpose.msra.mxu0 0
          %483 = vmatprep.subr.bf16.mxu0 0
          %484 = vmatpush1.bf16.xpose.msra.mxu0 0
          %485 = vmatprep.subr.bf16.mxu0 0
          %486 = vmatpush1.bf16.xpose.msra.mxu0 0
          %487 = vmatprep.subr.bf16.mxu0 0
          %488 = vmatpush1.bf16.xpose.msra.mxu0 0
          %489 = vmatprep.subr.bf16.mxu0 0
          %490 = vmatpush1.bf16.xpose.msra.mxu0 0
          %491 = vmatprep.subr.bf16.mxu0 0
          %492 = vmatpush1.bf16.xpose.msra.mxu0 0
          %493 = vmatprep.subr.bf16.mxu0 0
          %494 = vmatpush1.bf16.xpose.msra.mxu0 0
          %495 = vmatprep.mubr.bf16.mxu0 0
          %496 = vmatmul.mubr.bf16.gmra.mrb[0].mxu0 %v458
          %v497 = vpop.f32.mrb[0].mxu0
          %v498 = vadd.f32 0.0, %v497
          %v499 = vpop.f32.mrb[0].mxu0
          %v500 = vpop.f32.mrb[0].mxu0
          %v501 = vpop.f32.mrb[0].mxu0
          %502 = vdwg.mxu0
          %v503 = vlaneseq
          %v504 = vshrl.u32 %v503, 7
          %v505 = vlaneseq
          %v506 = vand.u32 %v505, 127
          %vm507 = vcmp.le.s32.totalorder %v506, %v504
          %v508 = vsel %vm507, %v498, -1e+30
          %v509 = vld [vmem:[#allocation2] sm:$0xff]
          %vm510 = vcmask 64512
          %v511 = vsel %vm510, %v508, -inf
          %512 = vmax.xlane.f32.xlu0 %v511
          %v513 = vpop.xlane.xlu0 %512
          %v514 = vmax.f32 %v509, %v513
          %v515 = vsub.f32 %v509, %v514
          %v516 = vmul.f32 %v515, 1.442695
          %v517 = vpow.pop %v516
          %519 = vset.pattern.permute.xlu0 0
          %520 = vperm.xlu0 %519, %v514
          %v521 = vpop.permute.xlu0 %520
          %v523 = vsub.f32 %v508, %v521
          %v524 = vmul.f32 %v523, 1.442695
          %v525 = vpow.pop %v524
          %v526 = vld [vmem:[#allocation3] sm:$0xff]
          %v527 = vmul.f32 %v517, %v526
          %v528 = vsel %vm510, %v525, 0.0
          %529 = vadd.xlane.f32.xlu0 %v528
          %v530 = vpop.xlane.xlu0 %529
          %v531 = vadd.f32 %v527, %v530
          %vm532 = vcmask 7168
          %533 = vst.msk [vmem:[#allocation3] sm:$0xff] %vm532, %v531
          %v534 = vld [vmem:[#allocation4] sm:$0xff]
          %536 = vset.pattern.permute.xlu0 0
          %537 = vperm.xlu0 %536, %v517
          %v538 = vpop.permute.xlu0 %537
          %v540 = vmul.f32 %v538, %v534
          %v541 = vpack.c.bf16 %v525, %v525
          %v542 = vld [vmem:[%s266] sm:$0xf]
          %v544 = vsel %vm510, %v541, 0
          %vm546 = vcmask 1043456
          %v548 = vsel %vm546, %v542, 0
          %550 = vmatprep.subr.bf16.mxu0 0
          %551 = vmatpush1.bf16.msra.mxu0 %v548
          %552 = vmatprep.subr.bf16.mxu0 0
          %553 = vmatpush1.bf16.msra.mxu0 0
          %554 = vmatprep.subr.bf16.mxu0 0
          %555 = vmatpush1.bf16.msra.mxu0 0
          %556 = vmatprep.subr.bf16.mxu0 0
          %557 = vmatpush1.bf16.msra.mxu0 0
          %558 = vmatprep.subr.bf16.mxu0 0
          %559 = vmatpush1.bf16.msra.mxu0 0
          %560 = vmatprep.subr.bf16.mxu0 0
          %561 = vmatpush1.bf16.msra.mxu0 0
          %562 = vmatprep.subr.bf16.mxu0 0
          %563 = vmatpush1.bf16.msra.mxu0 0
          %564 = vmatprep.subr.bf16.mxu0 0
          %565 = vmatpush1.bf16.msra.mxu0 0
          %566 = vmatprep.subr.bf16.mxu0 0
          %567 = vmatpush1.bf16.msra.mxu0 0
          %568 = vmatprep.subr.bf16.mxu0 0
          %569 = vmatpush1.bf16.msra.mxu0 0
          %570 = vmatprep.subr.bf16.mxu0 0
          %571 = vmatpush1.bf16.msra.mxu0 0
          %572 = vmatprep.subr.bf16.mxu0 0
          %573 = vmatpush1.bf16.msra.mxu0 0
          %574 = vmatprep.subr.bf16.mxu0 0
          %575 = vmatpush1.bf16.msra.mxu0 0
          %576 = vmatprep.subr.bf16.mxu0 0
          %577 = vmatpush1.bf16.msra.mxu0 0
          %578 = vmatprep.subr.bf16.mxu0 0
          %579 = vmatpush1.bf16.msra.mxu0 0
          %580 = vmatprep.subr.bf16.mxu0 0
          %581 = vmatpush1.bf16.msra.mxu0 0
          %582 = vmatprep.mubr.bf16.mxu0 0
          %583 = vmatmul.mubr.bf16.gmra.mrb[0].mxu0 %v544
          %v584 = vpop.f32.mrb[0].mxu0
          %v585 = vadd.f32 0.0, %v584
          %v586 = vpop.f32.mrb[0].mxu0
          %v587 = vpop.f32.mrb[0].mxu0
          %v588 = vpop.f32.mrb[0].mxu0
          %589 = vdwg.mxu0
          %v590 = vadd.f32 %v540, %v585
          %591 = vst.msk [vmem:[#allocation4] sm:$0xff] %vm456, %v590
          %592 = vst.msk [vmem:[#allocation2] sm:$0xff] %vm532, %v514
          %v593 = vld [vmem:[#allocation3] sm:$0xff]
          %v594 = vrcp.pop %v593
          %v595 = vld [vmem:[#allocation4] sm:$0xff]
          %597 = vset.pattern.permute.xlu0 0
          %598 = vperm.xlu0 %597, %v594
          %v599 = vpop.permute.xlu0 %598
          %v601 = vmul.f32 %v595, %v599
          %602 = vst.msk [vmem:[%s298] sm:$0xff] %vm456, %v601
        $region56: #{tpu_custom_call.1} parent=31 // pred_fallthru
          _
        %s603 = sand.u32 %s144, 1
        %s604 = scalar_lea.sflag [#allocation7], %s603
        %s605 = sand.u32 %s144, 1
        %s606 = smul.addr %s605, 8
        %s607 = scalar_lea.vmem [#allocation11], %s606
        // Predicated region
        $region57: #{tpu_custom_call.1} parent=31 // pred_check
          %p608 = pneg %p154
        $region58: #{tpu_custom_call.1} parent=31 // pred_check_branch
          %610 = sbr.rel (%p608) target = $region60
        $region59: #{tpu_custom_call.1} parent=31 // pred_region
          %s612 = ssub.s32 128, 128
          %613 = vsyncadd %s604, %s612
          %s614 = sadd.s32 %s29, %s28
          %s615 = smul.addr %s614, 128
          %s616 = scalar_lea.hbm %s3, %s615
          %s618 = sshll.u32 %s607, 4
          %s619 = int_to_ptr.vmem [resolvable:$true] %s618
          %621 = dma.vmem_to_hbm [thread:$0]  %s619, 128, %s616, %s604
        $region60: #{tpu_custom_call.1} parent=31 // pred_fallthru
          _
      $region32: #{tpu_custom_call.1} parent=5 // pred_fallthru
        _
      %p622 = scmp.le.s32.totalorder 2, %s18
      // Predicated region
      $region61: #{tpu_custom_call.1} parent=5 // pred_check
        %p623 = pneg %p622
      $region62: #{tpu_custom_call.1} parent=5 // pred_check_branch
        %625 = sbr.rel (%p623) target = $region64
      $region63: #{tpu_custom_call.1} parent=5 // pred_region
        %s626 = ssub.s32 %s18, 2
        // Predicated region
        $region65: #{tpu_custom_call.1} parent=63 // pred_check
          %p627 = pneg %p160
        $region66: #{tpu_custom_call.1} parent=63 // pred_check_branch
          %629 = sbr.rel (%p627) target = $region68
        $region67: #{tpu_custom_call.1} parent=63 // pred_region
          %s630 = sand.u32 %s145, 1
          %s631 = scalar_lea.sflag [#allocation7], %s630
          %s632 = sand.u32 %s145, 1
          %s633 = smul.addr %s632, 8
          %s634 = scalar_lea.vmem [#allocation11], %s633
          %635 = dma.done %s631, 128
        $region68: #{tpu_custom_call.1} parent=63 // pred_fallthru
          _
      $region64: #{tpu_custom_call.1} parent=5 // pred_fallthru
        _
    $region6: #{tpu_custom_call.1} parent=1 // loop_footer
      %s22 = sadd.s32 1, %s18
    $region7: #{tpu_custom_call.1} parent=1 // loop_footer_branch
      %17 = sbr.rel target = $region3
    $region8: #{tpu_custom_call.1} parent=1 // loop_exit
      _
    %636 = vsyncpa [#allocation6], 1
    %s637 = scalar_lea.sflag [#allocation6], 1
    %638 = vsyncpa %s637, 1
    %639 = vsyncpa [#allocation9], 1
    %s640 = scalar_lea.sflag [#allocation9], 1
    %641 = vsyncpa %s640, 1
    %642 = vsyncpa [#allocation7], 1
    %s643 = scalar_lea.sflag [#allocation7], 1
    %644 = vsyncpa %s643, 1

</llo_original>
